<compile_context>
chip_gen: v5e
topology: v5e:2x2
jax: 0.10.0
libtpu: 0.0.40
codegen_flags: <defaults>
</compile_context>

<pallas_src>
import functools

import jax
import jax.numpy as jnp
from jax.experimental import pallas as pl
from jax.experimental.pallas import tpu as pltpu


def _feature_masker_kernel(x_ref, o_ref, *, thr: float, tau: float):
    # x_ref / o_ref view: (block_rows, cols_padded) block in VMEM.
    x = x_ref[...].astype(jnp.float32)

    # Per-row (i.e. per-(n, c)) spatial min / max.  Lane padding is
    # edge-replicated in the wrapper, so it cannot perturb min/max.
    vmin = jnp.min(x, axis=-1, keepdims=True) - 1e-07
    vmax = jnp.max(x, axis=-1, keepdims=True) + 1e-07

    # Fold normalization + threshold + temperature into one per-row scale/bias:
    #   ((x - vmin) / (vmax - vmin) - thr) / tau  ==  x * scale + bias
    inv_range = pl.reciprocal(vmax - vmin, approx=False)   # (block_rows, 1)
    inv_tau = 1.0 / tau
    scale = inv_range * inv_tau                             # (block_rows, 1)
    bias = -(vmin * scale + thr * inv_tau)                  # (block_rows, 1)

    o_ref[...] = jax.nn.sigmoid(x * scale + bias).astype(o_ref.dtype)


def feature_masker(x: jnp.ndarray, thr: float = 0.5, tau: float = 0.07) -> jnp.ndarray:
    """Pallas equivalent of FeatureMasker.forward for an NCHW input."""
    n, c, h, w = x.shape
    rows = n * c
    cols = h * w

    itemsize = jnp.dtype(x.dtype).itemsize
    # Sublane tile for the dtype (sub-32-bit dtypes pack along sublanes).
    sublane = {4: 8, 2: 16, 1: 32}.get(itemsize, 8)

    # Flatten to (N*C, H*W): lane-dense last dim, contiguous reshape (free).
    x2 = x.reshape(rows, cols)

    # Pad the lane axis up to a multiple of 128 with edge-replicated values so
    # stores are unmasked full-vreg vst (min/max are unaffected by replication).
    cols_padded = ((cols + 127) // 128) * 128
    if cols_padded != cols:
        x2 = jnp.pad(x2, ((0, 0), (0, cols_padded - cols)), mode="edge")

    # Dtype-aware block sizing: ~6 MiB of input per block (review: 4-8 MiB
    # amortizes the ~0.35 us per-grid-step overhead and sits near the HBM
    # roofline), rounded to the dtype's sublane tile.
    bytes_per_row = cols_padded * itemsize
    target_block_bytes = 6 * 1024 * 1024
    block_rows = max(sublane, (target_block_bytes // bytes_per_row) // sublane * sublane)
    if block_rows >= rows:
        block_rows = rows                       # full extent: always legal

    grid = (pl.cdiv(rows, block_rows),)

    # Explicit VMEM budget: in + out double-buffered plus f32 compute temps,
    # with headroom, capped at 48 MiB (safe on v7x's 64 MiB physical VMEM).
    block_bytes = block_rows * bytes_per_row
    vmem_needed = 4 * block_bytes + 2 * block_rows * cols_padded * 4 + (8 << 20)
    vmem_limit = int(min(max(vmem_needed, 32 << 20), 48 << 20))
    # TODO(synk): for huge spatial maps (8 rows > budget, e.g. 1024x1024 f32)
    # add a column-tiled 2-D grid carrying running min/max in VMEM scratch.

    # Advisory cost: pure HBM-streaming (read+write), one exp per element.
    cost = pl.CostEstimate(
        flops=6 * rows * cols_padded,
        transcendentals=rows * cols_padded,
        bytes_accessed=2 * rows * cols_padded * itemsize,
    )

    kernel = functools.partial(_feature_masker_kernel, thr=float(thr), tau=float(tau))

    def _run(semantics):
        return pl.pallas_call(
            kernel,
            out_shape=jax.ShapeDtypeStruct((rows, cols_padded), x.dtype),
            grid=grid,
            in_specs=[pl.BlockSpec((block_rows, cols_padded), lambda i: (i, 0))],
            out_specs=pl.BlockSpec((block_rows, cols_padded), lambda i: (i, 0)),
            compiler_params=pltpu.CompilerParams(
                dimension_semantics=(semantics,),
                vmem_limit_bytes=vmem_limit,
            ),
            cost_estimate=cost,
        )(x2)

    try:
        # Core-parallel splits the row-block loop across v7x's two TensorCores
        # (each TC has its own DMA/HBM path); no-op / harmless on 1-TC chips.
        out2 = _run(pltpu.CORE_PARALLEL)
    except Exception:
        # Fall back if this generation/toolchain rejects core-parallel lowering.
        out2 = _run("parallel")

    if cols_padded != cols:
        out2 = out2[:, :cols]
    return out2.reshape(n, c, h, w)


def _reference(x: jnp.ndarray, thr: float = 0.5, tau: float = 0.07) -> jnp.ndarray:
    vmin = jnp.min(x, axis=(2, 3), keepdims=True) - 1e-07
    vmax = jnp.max(x, axis=(2, 3), keepdims=True) + 1e-07
    normed = (x - vmin) / (vmax - vmin)
    return jax.nn.sigmoid((normed - thr) / tau)


if __name__ == "__main__":
    key = jax.random.PRNGKey(0)
    # Small shapes consistent with the module's forward: NCHW image-like input.
    x = jax.random.normal(key, (2, 4, 16, 16), dtype=jnp.float32)

    out = feature_masker(x, thr=0.5, tau=0.07)
    out = jax.block_until_ready(out)

    ref = _reference(x, thr=0.5, tau=0.07)
    assert out.shape == x.shape and out.dtype == x.dtype
    assert jnp.allclose(out, ref, atol=1e-5, rtol=1e-5), "mismatch vs reference"

    print("KERNEL_OK")
</pallas_src>

<mosaic_0001>
module attributes {stable_mosaic.version = 11 : i64} {
  func.func @_feature_masker_kernel(%arg0: i32, %arg1: memref<8x256xf32, #tpu.memory_space<vmem>>, %arg2: memref<8x256xf32, #tpu.memory_space<vmem>>) attributes {dimension_semantics = [#tpu.dimension_semantics<core_parallel>], iteration_bounds = array<i64: 1>, scalar_prefetch = 0 : i64, scratch_operands = 0 : i64, tpu.core_type = #tpu.core_type<tc>, window_params = [{transform_indices = @transform_0, window_bounds = array<i64: 8, 256>}, {transform_indices = @transform_1, window_bounds = array<i64: 8, 256>}]} {
    %c0 = arith.constant 0 : index
    %c0_0 = arith.constant 0 : index
    %0 = vector.load %arg1[%c0, %c0_0] : memref<8x256xf32, #tpu.memory_space<vmem>>, vector<8x256xf32>
    %cst = arith.constant dense<0x7F800000> : vector<8xf32>
    %1 = vector.multi_reduction <minimumf>, %0, %cst [1] : vector<8x256xf32> to vector<8xf32>
    %2 = vector.shape_cast %1 : vector<8xf32> to vector<8x1xf32>
    %cst_1 = arith.constant 1.000000e-07 : f32
    %3 = vector.broadcast %cst_1 : f32 to vector<8x1xf32>
    %4 = arith.subf %2, %3 : vector<8x1xf32>
    %cst_2 = arith.constant dense<0xFF800000> : vector<8xf32>
    %5 = vector.multi_reduction <maximumf>, %0, %cst_2 [1] : vector<8x256xf32> to vector<8xf32>
    %6 = vector.shape_cast %5 : vector<8xf32> to vector<8x1xf32>
    %cst_3 = arith.constant 1.000000e-07 : f32
    %7 = vector.broadcast %cst_3 : f32 to vector<8x1xf32>
    %8 = arith.addf %6, %7 : vector<8x1xf32>
    %9 = arith.subf %8, %4 : vector<8x1xf32>
    %10 = tpu.reciprocal %9 : vector<8x1xf32> -> vector<8x1xf32>
    %cst_4 = arith.constant 14.2857141 : f32
    %11 = vector.broadcast %cst_4 : f32 to vector<8x1xf32>
    %12 = arith.mulf %10, %11 : vector<8x1xf32>
    %13 = arith.mulf %4, %12 : vector<8x1xf32>
    %cst_5 = arith.constant 7.14285707 : f32
    %14 = vector.broadcast %cst_5 : f32 to vector<8x1xf32>
    %15 = arith.addf %13, %14 : vector<8x1xf32>
    %cst_6 = arith.constant 0.000000e+00 : f32
    %16 = vector.broadcast %cst_6 : f32 to vector<8x1xf32>
    %17 = arith.subf %16, %15 : vector<8x1xf32>
    %18 = vector.broadcast %12 : vector<8x1xf32> to vector<8x256xf32>
    %19 = arith.mulf %0, %18 : vector<8x256xf32>
    %20 = vector.broadcast %17 : vector<8x1xf32> to vector<8x256xf32>
    %21 = arith.addf %19, %20 : vector<8x256xf32>
    %22 = arith.negf %21 : vector<8x256xf32>
    %23 = math.exp %22 : vector<8x256xf32>
    %cst_7 = arith.constant 1.000000e+00 : f32
    %24 = vector.broadcast %cst_7 : f32 to vector<8x256xf32>
    %25 = arith.addf %24, %23 : vector<8x256xf32>
    %26 = arith.divf %24, %25 : vector<8x256xf32>
    %c0_8 = arith.constant 0 : index
    %c0_9 = arith.constant 0 : index
    %27 = vector.load %arg2[%c0_8, %c0_9] : memref<8x256xf32, #tpu.memory_space<vmem>>, vector<8x256xf32>
    tpu.vector_store %arg2[%c0_8, %c0_9], %26 {strides = array<i32>} : memref<8x256xf32, #tpu.memory_space<vmem>>, vector<8x256xf32>,
    return
  }
  func.func @transform_0(%arg0: i32) -> (i32, i32) {
    %c0_i32 = arith.constant 0 : i32
    %c0_i32_0 = arith.constant 0 : i32
    return %arg0, %c0_i32 : i32, i32
  }
  func.func @transform_1(%arg0: i32) -> (i32, i32) {
    %c0_i32 = arith.constant 0 : i32
    %c0_i32_0 = arith.constant 0 : i32
    return %arg0, %c0_i32 : i32, i32
  }
}

module attributes {stable_mosaic.version = 11 : i64} {
  func.func @_feature_masker_kernel(%arg0: i32, %arg1: memref<8x256xf32, #tpu.memory_space<vmem>>, %arg2: memref<8x256xf32, #tpu.memory_space<vmem>>) attributes {dimension_semantics = [#tpu.dimension_semantics<parallel>], iteration_bounds = array<i64: 1>, scalar_prefetch = 0 : i64, scratch_operands = 0 : i64, tpu.core_type = #tpu.core_type<tc>, window_params = [{transform_indices = @transform_0, window_bounds = array<i64: 8, 256>}, {transform_indices = @transform_1, window_bounds = array<i64: 8, 256>}]} {
    %c0 = arith.constant 0 : index
    %c0_0 = arith.constant 0 : index
    %0 = vector.load %arg1[%c0, %c0_0] : memref<8x256xf32, #tpu.memory_space<vmem>>, vector<8x256xf32>
    %cst = arith.constant dense<0x7F800000> : vector<8xf32>
    %1 = vector.multi_reduction <minimumf>, %0, %cst [1] : vector<8x256xf32> to vector<8xf32>
    %2 = vector.shape_cast %1 : vector<8xf32> to vector<8x1xf32>
    %cst_1 = arith.constant 1.000000e-07 : f32
    %3 = vector.broadcast %cst_1 : f32 to vector<8x1xf32>
    %4 = arith.subf %2, %3 : vector<8x1xf32>
    %cst_2 = arith.constant dense<0xFF800000> : vector<8xf32>
    %5 = vector.multi_reduction <maximumf>, %0, %cst_2 [1] : vector<8x256xf32> to vector<8xf32>
    %6 = vector.shape_cast %5 : vector<8xf32> to vector<8x1xf32>
    %cst_3 = arith.constant 1.000000e-07 : f32
    %7 = vector.broadcast %cst_3 : f32 to vector<8x1xf32>
    %8 = arith.addf %6, %7 : vector<8x1xf32>
    %9 = arith.subf %8, %4 : vector<8x1xf32>
    %10 = tpu.reciprocal %9 : vector<8x1xf32> -> vector<8x1xf32>
    %cst_4 = arith.constant 14.2857141 : f32
    %11 = vector.broadcast %cst_4 : f32 to vector<8x1xf32>
    %12 = arith.mulf %10, %11 : vector<8x1xf32>
    %13 = arith.mulf %4, %12 : vector<8x1xf32>
    %cst_5 = arith.constant 7.14285707 : f32
    %14 = vector.broadcast %cst_5 : f32 to vector<8x1xf32>
    %15 = arith.addf %13, %14 : vector<8x1xf32>
    %cst_6 = arith.constant 0.000000e+00 : f32
    %16 = vector.broadcast %cst_6 : f32 to vector<8x1xf32>
    %17 = arith.subf %16, %15 : vector<8x1xf32>
    %18 = vector.broadcast %12 : vector<8x1xf32> to vector<8x256xf32>
    %19 = arith.mulf %0, %18 : vector<8x256xf32>
    %20 = vector.broadcast %17 : vector<8x1xf32> to vector<8x256xf32>
    %21 = arith.addf %19, %20 : vector<8x256xf32>
    %22 = arith.negf %21 : vector<8x256xf32>
    %23 = math.exp %22 : vector<8x256xf32>
    %cst_7 = arith.constant 1.000000e+00 : f32
    %24 = vector.broadcast %cst_7 : f32 to vector<8x256xf32>
    %25 = arith.addf %24, %23 : vector<8x256xf32>
    %26 = arith.divf %24, %25 : vector<8x256xf32>
    %c0_8 = arith.constant 0 : index
    %c0_9 = arith.constant 0 : index
    %27 = vector.load %arg2[%c0_8, %c0_9] : memref<8x256xf32, #tpu.memory_space<vmem>>, vector<8x256xf32>
    tpu.vector_store %arg2[%c0_8, %c0_9], %26 {strides = array<i32>} : memref<8x256xf32, #tpu.memory_space<vmem>>, vector<8x256xf32>,
    return
  }
  func.func @transform_0(%arg0: i32) -> (i32, i32) {
    %c0_i32 = arith.constant 0 : i32
    %c0_i32_0 = arith.constant 0 : i32
    return %arg0, %c0_i32 : i32, i32
  }
  func.func @transform_1(%arg0: i32) -> (i32, i32) {
    %c0_i32 = arith.constant 0 : i32
    %c0_i32_0 = arith.constant 0 : i32
    return %arg0, %c0_i32 : i32, i32
  }
}

</mosaic_0001>

<llo_original>
// kernel: tpu_custom_call.1
$region0: #{tpu_custom_call.1}
  #allocation0 [shape = 'u32[]', space=smem, size = 0x4, offset = 0x4, fixed_abs, tag = 'smem constant byte address 0x4 - core index']
  #allocation1 [shape = 'u32[72,128]{1,0:T(1,128)}', space=vmem, size = 0x9000, scoped, tag = 'internal scratch']
  %s0 = inlined_call_operand.hbm [shape: f32[8,256], index: 0, kind: input, shape index: {}]
  %s1 = inlined_call_operand.hbm [shape: f32[8,256], index: 1, kind: output, shape index: {}]
  %s2 = sld [smem:[#allocation0]]
  $region18: #{tpu_custom_call.1} parent=0
    _
  %s4 = ssub.s32 1, %s2
  %s5 = scalar_select 0, %s4, %s2
  $region1: #{tpu_custom_call.1} parent=0
    #allocation2 [shape = 'u8[8192]{0}', space=vmem, size = 0x2000, scoped, tag = 'input window, operand 0, single buffered']
    #allocation3 [shape = 's32[1]{0}', space=sflag, size = 0x4, scoped, tag = 'scoped memory for tpu_custom_call.1']
    #allocation4 [shape = 's32[1]{0}', space=sflag, size = 0x4, scoped, tag = 'scoped memory for tpu_custom_call.1']
    #allocation5 [shape = 'u8[8192]{0}', space=vmem, size = 0x2000, scoped, tag = 'output window, operand 0, single buffered']
    %6 = vsyncpa [#allocation3], 0
    %7 = vsyncpa [#allocation4], 0
    // Predicated region
    $region2: #{tpu_custom_call.1} parent=1 // pred_check
      _
    $region3: #{tpu_custom_call.1} parent=1 // pred_check_branch
      %9 = sbr.rel (0) target = $region5
    $region4: #{tpu_custom_call.1} parent=1 // pred_region
      %11 = vsyncadd [#allocation3], 0
      %s12 = smul.addr %s5, 2
      %s13 = smul.addr %s12, 8
      %s14 = scalar_lea.hbm %s0, %s13
      %s16 = sshll.u32 %s14, 4
      %s17 = int_to_ptr.hbm [resolvable:$true] %s16
      %s18 = sshll.u32 [#allocation2], 4
      %s19 = int_to_ptr.vmem [resolvable:$true] %s18
      %21 = dma.hbm_to_vmem [thread:$0]  %s17, 256, %s19, [#allocation3]
    $region5: #{tpu_custom_call.1} parent=1 // pred_fallthru
      _
    // Predicated region
    $region6: #{tpu_custom_call.1} parent=1 // pred_check
      _
    $region7: #{tpu_custom_call.1} parent=1 // pred_check_branch
      %23 = sbr.rel (0) target = $region9
    $region8: #{tpu_custom_call.1} parent=1 // pred_region
      %25 = dma.done [#allocation3], 256
    $region9: #{tpu_custom_call.1} parent=1 // pred_fallthru
      _
    %v26 = vld [vmem:[#allocation2] sm:$0xff]
    %v27 = vld [vmem:[#allocation2 + $0x8] sm:$0xff]
    %v28 = vmin.f32 %v26, %v27
    %29 = vmin.xlane.f32.xlu0 %v28
    %v30 = vpop.xlane.xlu0 %29
    %v31 = vsub.f32 %v30, 1e-07
    %v32 = vmax.f32 %v26, %v27
    %33 = vmax.xlane.f32.xlu0 %v32
    %v34 = vpop.xlane.xlu0 %33
    %v35 = vadd.f32 %v34, 1e-07
    %v36 = vsub.f32 %v35, %v31
    %v37 = vrcp.pop %v36
    %v38 = vmul.f32 %v36, %v37
    %v39 = vsub.f32 1.0, %v38
    %v40 = vmul.f32 %v37, %v39
    %v41 = vadd.f32 %v37, %v40
    %vm42 = vweird.f32 %v36
    %vm43 = vweird.f32 %v37
    %vm44 = vmor %vm42, %vm43
    %v45 = vsel %vm44, %v37, %v41
    %v46 = vand.u32 2147483647, %v36
    %vm47 = vcmp.eq.f32.partialorder %v46, 8.507059e+37
    %v48 = vand.u32 %v36, 2147483648
    %v49 = vor.u32 1.1754944e-38, %v48
    %v50 = vsel %vm47, %v49, %v45
    %v51 = vmul.f32 %v50, 14.285714
    %v52 = vmul.f32 %v31, %v51
    %v53 = vadd.f32 %v52, 7.142857
    %v54 = vsub.f32 0.0, %v53
    %v55 = vmul.f32 %v26, %v51
    %v56 = vmul.f32 %v27, %v51
    %v57 = vadd.f32 %v55, %v54
    %v58 = vadd.f32 %v56, %v54
    %v59 = vxor.u32 %v57, 2147483648
    %v60 = vxor.u32 %v58, 2147483648
    %v61 = vmul.f32 %v59, 1.442695
    %v62 = vpow.pop %v61
    %v63 = vmul.f32 %v60, 1.442695
    %v64 = vpow.pop %v63
    %v65 = vadd.f32 %v62, 1.0
    %v66 = vadd.f32 %v64, 1.0
    %v67 = vrcp.pop %v65
    %v68 = vmul.f32 %v65, %v67
    %v69 = vsub.f32 1.0, %v68
    %v70 = vmul.f32 %v67, %v69
    %v71 = vadd.f32 %v67, %v70
    %vm72 = vweird.f32 %v65
    %vm73 = vweird.f32 %v67
    %vm74 = vmor %vm72, %vm73
    %v75 = vsel %vm74, %v67, %v71
    %v76 = vand.u32 2147483647, %v65
    %vm77 = vcmp.eq.f32.partialorder %v76, 8.507059e+37
    %v78 = vand.u32 %v65, 2147483648
    %v79 = vor.u32 1.1754944e-38, %v78
    %v80 = vsel %vm77, %v79, %v75
    %v81 = vmul.f32 1.0, %v80
    %v82 = vrcp.pop %v66
    %v83 = vmul.f32 %v66, %v82
    %v84 = vsub.f32 1.0, %v83
    %v85 = vmul.f32 %v82, %v84
    %v86 = vadd.f32 %v82, %v85
    %vm87 = vweird.f32 %v66
    %vm88 = vweird.f32 %v82
    %vm89 = vmor %vm87, %vm88
    %v90 = vsel %vm89, %v82, %v86
    %v91 = vand.u32 2147483647, %v66
    %vm92 = vcmp.eq.f32.partialorder %v91, 8.507059e+37
    %v93 = vand.u32 %v66, 2147483648
    %v94 = vor.u32 1.1754944e-38, %v93
    %v95 = vsel %vm92, %v94, %v90
    %v96 = vmul.f32 1.0, %v95
    %97 = vst [vmem:[#allocation5] sm:$0xff] %v81
    %98 = vst [vmem:[#allocation5 + $0x8] sm:$0xff] %v96
    // Predicated region
    $region10: #{tpu_custom_call.1} parent=1 // pred_check
      _
    $region11: #{tpu_custom_call.1} parent=1 // pred_check_branch
      %100 = sbr.rel (0) target = $region13
    $region12: #{tpu_custom_call.1} parent=1 // pred_region
      %102 = vsyncadd [#allocation4], 0
      %s103 = smul.addr %s5, 2
      %s104 = smul.addr %s103, 8
      %s105 = scalar_lea.hbm %s1, %s104
      %s107 = sshll.u32 [#allocation5], 4
      %s108 = int_to_ptr.vmem [resolvable:$true] %s107
      %s109 = sshll.u32 %s105, 4
      %s110 = int_to_ptr.hbm [resolvable:$true] %s109
      %112 = dma.vmem_to_hbm [thread:$0]  %s108, 256, %s110, [#allocation4]
    $region13: #{tpu_custom_call.1} parent=1 // pred_fallthru
      _
    // Predicated region
    $region14: #{tpu_custom_call.1} parent=1 // pred_check
      _
    $region15: #{tpu_custom_call.1} parent=1 // pred_check_branch
      %114 = sbr.rel (0) target = $region17
    $region16: #{tpu_custom_call.1} parent=1 // pred_region
      %116 = dma.done [#allocation4], 256
    $region17: #{tpu_custom_call.1} parent=1 // pred_fallthru
      _
    %117 = vsyncpa [#allocation3], 1
    %118 = vsyncpa [#allocation4], 1

// kernel: tpu_custom_call.1
$region0: #{tpu_custom_call.1}
  #allocation0 [shape = 'u32[]', space=smem, size = 0x4, offset = 0x4, fixed_abs, tag = 'smem constant byte address 0x4 - core index']
  #allocation1 [shape = 'u32[72,128]{1,0:T(1,128)}', space=vmem, size = 0x9000, scoped, tag = 'internal scratch']
  %s0 = inlined_call_operand.hbm [shape: f32[8,256], index: 0, kind: input, shape index: {}]
  %s1 = inlined_call_operand.hbm [shape: f32[8,256], index: 1, kind: output, shape index: {}]
  %s2 = sld [smem:[#allocation0]]
  $region18: #{tpu_custom_call.1} parent=0
    _
  %s4 = ssub.s32 1, %s2
  %s5 = scalar_select 0, %s4, %s2
  $region1: #{tpu_custom_call.1} parent=0
    #allocation2 [shape = 'u8[8192]{0}', space=vmem, size = 0x2000, scoped, tag = 'input window, operand 0, single buffered']
    #allocation3 [shape = 's32[1]{0}', space=sflag, size = 0x4, scoped, tag = 'scoped memory for tpu_custom_call.1']
    #allocation4 [shape = 's32[1]{0}', space=sflag, size = 0x4, scoped, tag = 'scoped memory for tpu_custom_call.1']
    #allocation5 [shape = 'u8[8192]{0}', space=vmem, size = 0x2000, scoped, tag = 'output window, operand 0, single buffered']
    %6 = vsyncpa [#allocation3], 0
    %7 = vsyncpa [#allocation4], 0
    // Predicated region
    $region2: #{tpu_custom_call.1} parent=1 // pred_check
      _
    $region3: #{tpu_custom_call.1} parent=1 // pred_check_branch
      %9 = sbr.rel (0) target = $region5
    $region4: #{tpu_custom_call.1} parent=1 // pred_region
      %11 = vsyncadd [#allocation3], 0
      %s13 = sshll.u32 %s0, 4
      %s14 = int_to_ptr.hbm [resolvable:$true] %s13
      %s15 = sshll.u32 [#allocation2], 4
      %s16 = int_to_ptr.vmem [resolvable:$true] %s15
      %18 = dma.hbm_to_vmem [thread:$0]  %s14, 256, %s16, [#allocation3]
    $region5: #{tpu_custom_call.1} parent=1 // pred_fallthru
      _
    // Predicated region
    $region6: #{tpu_custom_call.1} parent=1 // pred_check
      _
    $region7: #{tpu_custom_call.1} parent=1 // pred_check_branch
      %20 = sbr.rel (0) target = $region9
    $region8: #{tpu_custom_call.1} parent=1 // pred_region
      %22 = dma.done [#allocation3], 256
    $region9: #{tpu_custom_call.1} parent=1 // pred_fallthru
      _
    %v23 = vld [vmem:[#allocation2] sm:$0xff]
    %v24 = vld [vmem:[#allocation2 + $0x8] sm:$0xff]
    %v25 = vmin.f32 %v23, %v24
    %26 = vmin.xlane.f32.xlu0 %v25
    %v27 = vpop.xlane.xlu0 %26
    %v28 = vsub.f32 %v27, 1e-07
    %v29 = vmax.f32 %v23, %v24
    %30 = vmax.xlane.f32.xlu0 %v29
    %v31 = vpop.xlane.xlu0 %30
    %v32 = vadd.f32 %v31, 1e-07
    %v33 = vsub.f32 %v32, %v28
    %v34 = vrcp.pop %v33
    %v35 = vmul.f32 %v33, %v34
    %v36 = vsub.f32 1.0, %v35
    %v37 = vmul.f32 %v34, %v36
    %v38 = vadd.f32 %v34, %v37
    %vm39 = vweird.f32 %v33
    %vm40 = vweird.f32 %v34
    %vm41 = vmor %vm39, %vm40
    %v42 = vsel %vm41, %v34, %v38
    %v43 = vand.u32 2147483647, %v33
    %vm44 = vcmp.eq.f32.partialorder %v43, 8.507059e+37
    %v45 = vand.u32 %v33, 2147483648
    %v46 = vor.u32 1.1754944e-38, %v45
    %v47 = vsel %vm44, %v46, %v42
    %v48 = vmul.f32 %v47, 14.285714
    %v49 = vmul.f32 %v28, %v48
    %v50 = vadd.f32 %v49, 7.142857
    %v51 = vsub.f32 0.0, %v50
    %v52 = vmul.f32 %v23, %v48
    %v53 = vmul.f32 %v24, %v48
    %v54 = vadd.f32 %v52, %v51
    %v55 = vadd.f32 %v53, %v51
    %v56 = vxor.u32 %v54, 2147483648
    %v57 = vxor.u32 %v55, 2147483648
    %v58 = vmul.f32 %v56, 1.442695
    %v59 = vpow.pop %v58
    %v60 = vmul.f32 %v57, 1.442695
    %v61 = vpow.pop %v60
    %v62 = vadd.f32 %v59, 1.0
    %v63 = vadd.f32 %v61, 1.0
    %v64 = vrcp.pop %v62
    %v65 = vmul.f32 %v62, %v64
    %v66 = vsub.f32 1.0, %v65
    %v67 = vmul.f32 %v64, %v66
    %v68 = vadd.f32 %v64, %v67
    %vm69 = vweird.f32 %v62
    %vm70 = vweird.f32 %v64
    %vm71 = vmor %vm69, %vm70
    %v72 = vsel %vm71, %v64, %v68
    %v73 = vand.u32 2147483647, %v62
    %vm74 = vcmp.eq.f32.partialorder %v73, 8.507059e+37
    %v75 = vand.u32 %v62, 2147483648
    %v76 = vor.u32 1.1754944e-38, %v75
    %v77 = vsel %vm74, %v76, %v72
    %v78 = vmul.f32 1.0, %v77
    %v79 = vrcp.pop %v63
    %v80 = vmul.f32 %v63, %v79
    %v81 = vsub.f32 1.0, %v80
    %v82 = vmul.f32 %v79, %v81
    %v83 = vadd.f32 %v79, %v82
    %vm84 = vweird.f32 %v63
    %vm85 = vweird.f32 %v79
    %vm86 = vmor %vm84, %vm85
    %v87 = vsel %vm86, %v79, %v83
    %v88 = vand.u32 2147483647, %v63
    %vm89 = vcmp.eq.f32.partialorder %v88, 8.507059e+37
    %v90 = vand.u32 %v63, 2147483648
    %v91 = vor.u32 1.1754944e-38, %v90
    %v92 = vsel %vm89, %v91, %v87
    %v93 = vmul.f32 1.0, %v92
    %94 = vst [vmem:[#allocation5] sm:$0xff] %v78
    %95 = vst [vmem:[#allocation5 + $0x8] sm:$0xff] %v93
    // Predicated region
    $region10: #{tpu_custom_call.1} parent=1 // pred_check
      _
    $region11: #{tpu_custom_call.1} parent=1 // pred_check_branch
      %97 = sbr.rel (0) target = $region13
    $region12: #{tpu_custom_call.1} parent=1 // pred_region
      %99 = vsyncadd [#allocation4], 0
      %s101 = sshll.u32 [#allocation5], 4
      %s102 = int_to_ptr.vmem [resolvable:$true] %s101
      %s103 = sshll.u32 %s1, 4
      %s104 = int_to_ptr.hbm [resolvable:$true] %s103
      %106 = dma.vmem_to_hbm [thread:$0]  %s102, 256, %s104, [#allocation4]
    $region13: #{tpu_custom_call.1} parent=1 // pred_fallthru
      _
    // Predicated region
    $region14: #{tpu_custom_call.1} parent=1 // pred_check
      _
    $region15: #{tpu_custom_call.1} parent=1 // pred_check_branch
      %108 = sbr.rel (0) target = $region17
    $region16: #{tpu_custom_call.1} parent=1 // pred_region
      %110 = dma.done [#allocation4], 256
    $region17: #{tpu_custom_call.1} parent=1 // pred_fallthru
      _
    %111 = vsyncpa [#allocation3], 1
    %112 = vsyncpa [#allocation4], 1

</llo_original>
